<compile_context>
chip_gen: v7x
topology: tpu7x:2x2x1
jax: 0.10.0
libtpu: 0.0.40
codegen_flags: <defaults>
</compile_context>

<pallas_src>
import functools

import jax
import jax.numpy as jnp
from jax import lax
from jax.experimental import pallas as pl
from jax.experimental.pallas import tpu as pltpu


def _round_up(x, m):
    return (x + m - 1) // m * m


# ---------------------------------------------------------------------------
# Kernel: one batch tile -> (TB, D_pad) output.
# refs: x (TB, L_alloc, E) bf16, packed conv weight (K_pad, F_pad) bf16,
#       conv bias (1, F_pad) f32, dense weight^T (F_pad, D_pad) bf16,
#       dense bias (1, D_pad) f32, output (TB, D_pad) f32,
#       running-max scratch (TB, F_pad) f32.
# ---------------------------------------------------------------------------
def _text_cnn_head_kernel(x_ref, wc_ref, bc_ref, dwt_ref, db_ref, out_ref, maxf_ref,
                          *, kernel_sizes, n_kernels, seq_len, chunk_t, halo):
    TB, _, E = x_ref.shape
    K_pad, F_pad = wc_ref.shape
    C = n_kernels
    L = seq_len
    k_max = max(kernel_sizes)
    KE = k_max * E
    TL = chunk_t
    n_chunks = (L + TL - 1) // TL

    # Per-lane valid prefix length: branch j owns lanes [j*C, (j+1)*C); its conv
    # output is valid for t < L - k_j + 1. Padded lanes get 0 (always masked).
    lane = lax.broadcasted_iota(jnp.int32, (TL, F_pad), 1)
    valid_len = jnp.zeros((TL, F_pad), jnp.int32)
    for j, k in enumerate(kernel_sizes):
        valid_len = jnp.where((lane >= j * C) & (lane < (j + 1) * C), L - k + 1, valid_len)
    t_local = lax.broadcasted_iota(jnp.int32, (TL, F_pad), 0)

    zero_pad = None
    if K_pad > KE:  # lane-dense im2col operand (hoisted out of the chunk loop)
        zero_pad = jnp.zeros((TB, TL, K_pad - KE), x_ref.dtype)

    # ---- Chunked conv (im2col fat-K matmul) + masked running max. ----
    # TODO(synk): for very long sequences switch this static unroll to lax.fori_loop.
    for c in range(n_chunks):
        t0 = c * TL
        # One sublane-aligned load of the chunk plus halo rows.
        xa = x_ref[:, t0:t0 + TL + halo, :]                    # (TB, TL+halo, E) bf16
        # Per-tap shifts happen on the loaded vregs (no misaligned ref reads).
        taps = [xa[:, i:i + TL, :] for i in range(k_max)]      # k_max x (TB, TL, E)
        if zero_pad is not None:
            taps.append(zero_pad)
        cols = jnp.concatenate(taps, axis=-1)                  # (TB, TL, K_pad) im2col

        # cols @ wc : contraction K = k_max*E (padded to 128) -> full MXU depth.
        y = lax.dot_general(cols, wc_ref[...],
                            dimension_numbers=(((2,), (0,)), ((), ())),
                            preferred_element_type=jnp.float32)  # (TB, TL, F_pad) f32

        # Single pre-masked reduction over the full, aligned chunk.
        valid = (t0 + t_local) < valid_len                     # (TL, F_pad)
        y = jnp.where(valid[None, :, :], y, -jnp.inf)
        cmax = jnp.max(y, axis=1)                              # (TB, F_pad)
        if c == 0:
            maxf_ref[...] = cmax
        else:
            maxf_ref[...] = jnp.maximum(maxf_ref[...], cmax)

    # ---- Hoisted conv bias + ReLU (exact), then dense head (lane-dense out). ----
    feat = jnp.maximum(maxf_ref[...] + bc_ref[...], 0.0)       # (TB, F_pad)
    out = lax.dot_general(feat.astype(dwt_ref.dtype), dwt_ref[...],
                          dimension_numbers=(((1,), (0,)), ((), ())),
                          preferred_element_type=jnp.float32)  # (TB, D_pad)
    out_ref[...] = jnp.maximum(out + db_ref[...], 0.0)


# ---------------------------------------------------------------------------
# Wrapper: packs/pads operands (bf16), sizes the batch tile from a VMEM
# budget, sets up the batch-tiled grid, calls.
# ---------------------------------------------------------------------------
def text_cnn_head(x, conv_params, dense_w, dense_b, kernel_sizes,
                  *, batch_tile=None, vmem_limit_bytes=None):
    """x: (B, L, E)  (PyTorch (B,1,L,E) with the channel axis squeezed);
       conv_params: [(w_(C,k,E), b_(C,)) per kernel]; dense_w: (D, F=len(kernels)*C)."""
    B, L, E = x.shape
    C = conv_params[0][0].shape[0]
    F = len(kernel_sizes) * C
    D = dense_w.shape[0]
    k_max = max(kernel_sizes)
    if L < k_max:
        raise ValueError(f"seq_len={L} must be >= max kernel size {k_max}")

    # Sequence chunking: TL rows of t per inner step, plus an aligned halo.
    TL = min(128, _round_up(L, 8))
    n_chunks = -(-L // TL)
    halo = _round_up(k_max - 1, 8)
    L_alloc = n_chunks * TL + halo

    F_pad = _round_up(max(F, 1), 128)          # lane-dense feature dim
    D_pad = _round_up(max(D, 1), 128)          # lane-dense output dim
    KE = k_max * E
    K_pad = _round_up(KE, 128)                 # lane-dense contraction dim

    B8 = _round_up(max(B, 1), 8)

    def footprint(tb):  # per-tile VMEM bytes (double-buffered I/O + scratch + chunk temps)
        x_blk = tb * L_alloc * E * 2
        out_blk = tb * D_pad * 4
        scratch = tb * F_pad * 4
        chunk_live = tb * (TL + halo) * E * 2 + tb * TL * (K_pad * 2 + F_pad * 4)
        return 2 * (x_blk + out_blk) + scratch + chunk_live

    budget = 32 * 1024 * 1024                  # conservative: v7x has 64 MiB VMEM per TC
    if batch_tile is not None:
        TB = batch_tile
    else:
        TB = 8
        for cand in (256, 128, 64, 32, 16, 8):
            if cand <= B8 and footprint(cand) <= budget:
                TB = cand
                break
        # Prefer >= 4 grid steps (2 TensorCores on v7x + pipeline overlap) when B allows.
        while TB > 8 and B8 // TB < 4:
            TB //= 2
    B_pad = _round_up(B8, TB)

    # ---- Pack operands: bf16 MXU inputs, f32 biases, zero padding. ----
    xp = jnp.zeros((B_pad, L_alloc, E), jnp.bfloat16).at[:B, :L, :].set(x.astype(jnp.bfloat16))

    # wc[i*E + e, j*C + c] = w_j[c, i, e]; rows for taps i >= k_j stay zero.
    wc = jnp.zeros((K_pad, F_pad), jnp.float32)
    bc = jnp.zeros((1, F_pad), jnp.float32)
    for j, ((w, b), k) in enumerate(zip(conv_params, kernel_sizes)):
        w_t = jnp.transpose(w, (1, 2, 0)).reshape(k * E, C)
        wc = wc.at[:k * E, j * C:(j + 1) * C].set(w_t)
        bc = bc.at[0, j * C:(j + 1) * C].set(b)
    wc = wc.astype(jnp.bfloat16)

    dwt = jnp.zeros((F_pad, D_pad), jnp.float32).at[:F, :D].set(dense_w.T).astype(jnp.bfloat16)
    db = jnp.zeros((1, D_pad), jnp.float32).at[0, :D].set(dense_b)

    if vmem_limit_bytes is None:
        weight_bytes = 2 * (K_pad * F_pad * 2 + F_pad * 4 + F_pad * D_pad * 2 + D_pad * 4)
        need = footprint(TB) + weight_bytes
        vmem_limit_bytes = int(min(max(need * 5 // 4, 32 * 1024 * 1024), 64 * 1024 * 1024))

    kernel = functools.partial(_text_cnn_head_kernel,
                               kernel_sizes=tuple(kernel_sizes),
                               n_kernels=C, seq_len=L, chunk_t=TL, halo=halo)

    out = pl.pallas_call(
        kernel,
        out_shape=jax.ShapeDtypeStruct((B_pad, D_pad), jnp.float32),
        grid=(pl.cdiv(B_pad, TB),),
        in_specs=[
            pl.BlockSpec((TB, L_alloc, E), lambda i: (i, 0, 0)),     # batch-tiled input
            pl.BlockSpec((K_pad, F_pad), lambda i: (0, 0)),          # resident conv weight
            pl.BlockSpec((1, F_pad), lambda i: (0, 0)),
            pl.BlockSpec((F_pad, D_pad), lambda i: (0, 0)),
            pl.BlockSpec((1, D_pad), lambda i: (0, 0)),
        ],
        out_specs=pl.BlockSpec((TB, D_pad), lambda i: (i, 0)),
        scratch_shapes=[pltpu.VMEM((TB, F_pad), jnp.float32)],       # running max (no L scaling)
        compiler_params=pltpu.CompilerParams(
            dimension_semantics=("parallel",),
            vmem_limit_bytes=vmem_limit_bytes),
    )(xp, wc, bc, dwt, db)

    return out[:B, :D]


# ---------------------------------------------------------------------------
# Pure-JAX f32 reference (mirrors the PyTorch forward exactly).
# ---------------------------------------------------------------------------
def text_cnn_head_ref(x, conv_params, dense_w, dense_b, kernel_sizes):
    B, L, E = x.shape
    feats = []
    for (w, b), k in zip(conv_params, kernel_sizes):
        C = w.shape[0]
        T = L - k + 1
        cols = []
        for t in range(T):
            window = x[:, t:t + k, :].reshape(B, k * E)        # (B, k*E)
            cols.append(window @ w.reshape(C, k * E).T + b)    # (B, C)
        conv = jnp.stack(cols, axis=1)                         # (B, T, C)
        conv = jnp.maximum(conv, 0.0)                          # ReLU
        feats.append(conv.max(axis=1))                         # global max pool
    feat = jnp.concatenate(feats, axis=-1)                     # (B, n_branches*C)
    return jnp.maximum(feat @ dense_w.T + dense_b, 0.0)        # Linear + ReLU


if __name__ == "__main__":
    # Module-consistent config: embedding_size=32, kernels=(2,3), n_kernels=4, dense=8
    B, L, E = 2, 16, 32
    kernel_sizes = (2, 3)
    n_kernels = 4
    dense_layer_size = 8
    F = len(kernel_sizes) * n_kernels

    key = jax.random.PRNGKey(0)
    keys = jax.random.split(key, 2 * len(kernel_sizes) + 3)

    # Input: PyTorch module expects (B, 1, L, E); kernel uses the squeezed (B, L, E).
    x = jax.random.normal(keys[0], (B, L, E), dtype=jnp.float32)

    conv_params = []
    for j, k in enumerate(kernel_sizes):
        w = 0.1 * jax.random.normal(keys[1 + 2 * j], (n_kernels, k, E),
                                    dtype=jnp.float32)   # Conv2d weight (C,1,k,E) squeezed
        b = 0.1 * jax.random.normal(keys[2 + 2 * j], (n_kernels,),
                                    dtype=jnp.float32)   # Conv2d bias
        conv_params.append((w, b))
    dense_w = 0.1 * jax.random.normal(keys[-2], (dense_layer_size, F),
                                      dtype=jnp.float32)  # Linear weight
    dense_b = 0.1 * jax.random.normal(keys[-1], (dense_layer_size,),
                                      dtype=jnp.float32)  # Linear bias

    out = text_cnn_head(x, conv_params, dense_w, dense_b, kernel_sizes)
    out = jax.block_until_ready(out)

    ref = text_cnn_head_ref(x, conv_params, dense_w, dense_b, kernel_sizes)
    assert out.shape == (B, dense_layer_size)
    # bf16 MXU operands (f32 accumulation) -> relaxed tolerance vs. the f32 reference.
    assert jnp.allclose(out, ref, atol=5e-2, rtol=5e-2), (out, ref)

    print("KERNEL_OK")
</pallas_src>

<mosaic_0001>
module attributes {stable_mosaic.version = 11 : i64} {
  func.func @_text_cnn_head_kernel(%arg0: i32, %arg1: memref<8x24x32xbf16, #tpu.memory_space<vmem>>, %arg2: memref<128x128xbf16, #tpu.memory_space<vmem>>, %arg3: memref<1x128xf32, #tpu.memory_space<vmem>>, %arg4: memref<128x128xbf16, #tpu.memory_space<vmem>>, %arg5: memref<1x128xf32, #tpu.memory_space<vmem>>, %arg6: memref<8x128xf32, #tpu.memory_space<vmem>>, %arg7: memref<8x128xf32, #tpu.memory_space<vmem>>) attributes {dimension_semantics = [#tpu.dimension_semantics<parallel>], iteration_bounds = array<i64: 1>, scalar_prefetch = 0 : i64, scratch_operands = 1 : i64, tpu.core_type = #tpu.core_type<tc>, window_params = [{transform_indices = @transform_0, window_bounds = array<i64: 8, 24, 32>}, {pipeline_mode = #tpu.pipeline_mode<synchronous>, transform_indices = @transform_1, window_bounds = array<i64: 128, 128>}, {pipeline_mode = #tpu.pipeline_mode<synchronous>, transform_indices = @transform_2, window_bounds = array<i64: 1, 128>}, {pipeline_mode = #tpu.pipeline_mode<synchronous>, transform_indices = @transform_3, window_bounds = array<i64: 128, 128>}, {pipeline_mode = #tpu.pipeline_mode<synchronous>, transform_indices = @transform_4, window_bounds = array<i64: 1, 128>}, {transform_indices = @transform_5, window_bounds = array<i64: 8, 128>}]} {
    %0 = tpu.iota {dimensions = array<i32: 1>} : vector<16x128xi32>
    %c0_i32 = arith.constant 0 : i32
    %1 = vector.broadcast %c0_i32 : i32 to vector<16x128xi32>
    %c0_i32_0 = arith.constant 0 : i32
    %2 = vector.broadcast %c0_i32_0 : i32 to vector<16x128xi32>
    %3 = arith.cmpi sge, %0, %2 : vector<16x128xi32>
    %c4_i32 = arith.constant 4 : i32
    %4 = vector.broadcast %c4_i32 : i32 to vector<16x128xi32>
    %5 = arith.cmpi slt, %0, %4 : vector<16x128xi32>
    %6 = arith.andi %3, %5 : vector<16x128xi1>
    %c15_i32 = arith.constant 15 : i32
    %7 = vector.broadcast %c15_i32 : i32 to vector<16x128xi32>
    %8 = arith.select %6, %7, %1 : vector<16x128xi1>, vector<16x128xi32>
    %c4_i32_1 = arith.constant 4 : i32
    %9 = vector.broadcast %c4_i32_1 : i32 to vector<16x128xi32>
    %10 = arith.cmpi sge, %0, %9 : vector<16x128xi32>
    %c8_i32 = arith.constant 8 : i32
    %11 = vector.broadcast %c8_i32 : i32 to vector<16x128xi32>
    %12 = arith.cmpi slt, %0, %11 : vector<16x128xi32>
    %13 = arith.andi %10, %12 : vector<16x128xi1>
    %c14_i32 = arith.constant 14 : i32
    %14 = vector.broadcast %c14_i32 : i32 to vector<16x128xi32>
    %15 = arith.select %13, %14, %8 : vector<16x128xi1>, vector<16x128xi32>
    %16 = tpu.iota {dimensions = array<i32: 0>} : vector<16x128xi32>
    %cst = arith.constant 0.000000e+00 : bf16
    %17 = vector.broadcast %cst : bf16 to vector<8x16x32xbf16>
    %c0 = arith.constant 0 : index
    %c0_2 = arith.constant 0 : index
    %c0_3 = arith.constant 0 : index
    %18 = vector.load %arg1[%c0, %c0_2, %c0_3] : memref<8x24x32xbf16, #tpu.memory_space<vmem>>, vector<8x24x32xbf16>
    %19 = vector.extract_strided_slice %18 {offsets = [0, 0, 0], sizes = [8, 16, 32], strides = [1, 1, 1]} : vector<8x24x32xbf16> to vector<8x16x32xbf16>
    %20 = vector.extract_strided_slice %18 {offsets = [0, 1, 0], sizes = [8, 16, 32], strides = [1, 1, 1]} : vector<8x24x32xbf16> to vector<8x16x32xbf16>
    %21 = vector.extract_strided_slice %18 {offsets = [0, 2, 0], sizes = [8, 16, 32], strides = [1, 1, 1]} : vector<8x24x32xbf16> to vector<8x16x32xbf16>
    %22 = tpu.concatenate %19, %20, %21, %17 in 2 : vector<8x16x32xbf16>, vector<8x16x32xbf16>, vector<8x16x32xbf16>, vector<8x16x32xbf16> -> vector<8x16x128xbf16>
    %c0_4 = arith.constant 0 : index
    %c0_5 = arith.constant 0 : index
    %23 = vector.load %arg2[%c0_4, %c0_5] : memref<128x128xbf16, #tpu.memory_space<vmem>>, vector<128x128xbf16>
    %cst_6 = arith.constant dense<0.000000e+00> : vector<8x16x128xf32>
    %24 = tpu.matmul %22, %23, %cst_6 {dimension_numbers = #tpu.dot_dimension_numbers<[2], [0], [0, 1], [1], [0, 0, 0, 1, 1, 1], [], []>} : vector<8x16x128xbf16>, vector<128x128xbf16>, vector<8x16x128xf32> -> vector<8x16x128xf32>
    %c0_i32_7 = arith.constant 0 : i32
    %25 = vector.broadcast %c0_i32_7 : i32 to vector<16x128xi32>
    %26 = arith.addi %25, %16 : vector<16x128xi32>
    %27 = arith.cmpi slt, %26, %15 : vector<16x128xi32>
    %28 = vector.shape_cast %27 : vector<16x128xi1> to vector<1x16x128xi1>
    %cst_8 = arith.constant 0xFF800000 : f32
    %29 = vector.shape_cast %28 : vector<1x16x128xi1> to vector<1x16x128xi1>
    %30 = vector.broadcast %29 : vector<1x16x128xi1> to vector<8x16x128xi1>
    %31 = vector.broadcast %cst_8 : f32 to vector<8x16x128xf32>
    %32 = arith.select %30, %24, %31 : vector<8x16x128xi1>, vector<8x16x128xf32>
    %cst_9 = arith.constant dense<0xFF800000> : vector<8x128xf32>
    %33 = vector.multi_reduction <maximumf>, %32, %cst_9 [1] : vector<8x16x128xf32> to vector<8x128xf32>
    %c0_10 = arith.constant 0 : index
    %c0_11 = arith.constant 0 : index
    %34 = vector.load %arg7[%c0_10, %c0_11] : memref<8x128xf32, #tpu.memory_space<vmem>>, vector<8x128xf32>
    tpu.vector_store %arg7[%c0_10, %c0_11], %33 {strides = array<i32>} : memref<8x128xf32, #tpu.memory_space<vmem>>, vector<8x128xf32>,
    %c0_12 = arith.constant 0 : index
    %c0_13 = arith.constant 0 : index
    %35 = vector.load %arg7[%c0_12, %c0_13] : memref<8x128xf32, #tpu.memory_space<vmem>>, vector<8x128xf32>
    %c0_14 = arith.constant 0 : index
    %c0_15 = arith.constant 0 : index
    %36 = vector.load %arg3[%c0_14, %c0_15] : memref<1x128xf32, #tpu.memory_space<vmem>>, vector<1x128xf32>
    %37 = vector.broadcast %36 : vector<1x128xf32> to vector<8x128xf32>
    %38 = arith.addf %35, %37 : vector<8x128xf32>
    %cst_16 = arith.constant 0.000000e+00 : f32
    %39 = vector.broadcast %cst_16 : f32 to vector<8x128xf32>
    %40 = arith.maximumf %38, %39 : vector<8x128xf32>
    %41 = arith.truncf %40 : vector<8x128xf32> to vector<8x128xbf16>
    %c0_17 = arith.constant 0 : index
    %c0_18 = arith.constant 0 : index
    %42 = vector.load %arg4[%c0_17, %c0_18] : memref<128x128xbf16, #tpu.memory_space<vmem>>, vector<128x128xbf16>
    %cst_19 = arith.constant dense<0.000000e+00> : vector<8x128xf32>
    %43 = tpu.matmul %41, %42, %cst_19 {dimension_numbers = #tpu.dot_dimension_numbers<[1], [0], [0], [1], [0, 0, 1, 1], [], []>} : vector<8x128xbf16>, vector<128x128xbf16>, vector<8x128xf32> -> vector<8x128xf32>
    %c0_20 = arith.constant 0 : index
    %c0_21 = arith.constant 0 : index
    %44 = vector.load %arg5[%c0_20, %c0_21] : memref<1x128xf32, #tpu.memory_space<vmem>>, vector<1x128xf32>
    %45 = vector.broadcast %44 : vector<1x128xf32> to vector<8x128xf32>
    %46 = arith.addf %43, %45 : vector<8x128xf32>
    %cst_22 = arith.constant 0.000000e+00 : f32
    %47 = vector.broadcast %cst_22 : f32 to vector<8x128xf32>
    %48 = arith.maximumf %46, %47 : vector<8x128xf32>
    %c0_23 = arith.constant 0 : index
    %c0_24 = arith.constant 0 : index
    %49 = vector.load %arg6[%c0_23, %c0_24] : memref<8x128xf32, #tpu.memory_space<vmem>>, vector<8x128xf32>
    tpu.vector_store %arg6[%c0_23, %c0_24], %48 {strides = array<i32>} : memref<8x128xf32, #tpu.memory_space<vmem>>, vector<8x128xf32>,
    return
  }
  func.func @transform_0(%arg0: i32) -> (i32, i32, i32) {
    %c0_i32 = arith.constant 0 : i32
    %c0_i32_0 = arith.constant 0 : i32
    %c0_i32_1 = arith.constant 0 : i32
    return %arg0, %c0_i32, %c0_i32_0 : i32, i32, i32
  }
  func.func @transform_1(%arg0: i32) -> (i32, i32) {
    %c0_i32 = arith.constant 0 : i32
    %c0_i32_0 = arith.constant 0 : i32
    %c0_i32_1 = arith.constant 0 : i32
    return %c0_i32, %c0_i32_0 : i32, i32
  }
  func.func @transform_2(%arg0: i32) -> (i32, i32) {
    %c0_i32 = arith.constant 0 : i32
    %c0_i32_0 = arith.constant 0 : i32
    %c0_i32_1 = arith.constant 0 : i32
    return %c0_i32, %c0_i32_0 : i32, i32
  }
  func.func @transform_3(%arg0: i32) -> (i32, i32) {
    %c0_i32 = arith.constant 0 : i32
    %c0_i32_0 = arith.constant 0 : i32
    %c0_i32_1 = arith.constant 0 : i32
    return %c0_i32, %c0_i32_0 : i32, i32
  }
  func.func @transform_4(%arg0: i32) -> (i32, i32) {
    %c0_i32 = arith.constant 0 : i32
    %c0_i32_0 = arith.constant 0 : i32
    %c0_i32_1 = arith.constant 0 : i32
    return %c0_i32, %c0_i32_0 : i32, i32
  }
  func.func @transform_5(%arg0: i32) -> (i32, i32) {
    %c0_i32 = arith.constant 0 : i32
    %c0_i32_0 = arith.constant 0 : i32
    return %arg0, %c0_i32 : i32, i32
  }
}

</mosaic_0001>

<llo_original>
// kernel: tpu_custom_call.1
$region0: #{tpu_custom_call.1}
  #allocation0 [shape = 'u32[]', space=smem, size = 0x4, offset = 0x4, fixed_abs, tag = 'smem constant byte address 0x4 - core index']
  #allocation1 [shape = 'u32[144,128]{1,0:T(1,128)}', space=vmem, size = 0x12000, scoped, tag = 'internal scratch']
  #allocation2 [shape = 'f32[8,128]{1,0:T(8,128)}', space=vmem, size = 0x1000, scoped, tag = 'scratch operand']
  %s0 = inlined_call_operand.hbm [shape: bf16[8,24,32], index: 0, kind: input, shape index: {}]
  %s1 = inlined_call_operand.hbm [shape: bf16[128,128], index: 1, kind: input, shape index: {}]
  %s2 = inlined_call_operand.vmem [shape: f32[1,128], index: 2, kind: input, shape index: {}]
  %s3 = inlined_call_operand.hbm [shape: bf16[128,128], index: 3, kind: input, shape index: {}]
  %s4 = inlined_call_operand.vmem [shape: f32[1,128], index: 4, kind: input, shape index: {}]
  %s5 = inlined_call_operand.hbm [shape: f32[8,128], index: 5, kind: output, shape index: {}]
  %s6 = sld [smem:[#allocation0]]
  $region42: #{tpu_custom_call.1} parent=0
    _
  %s8 = ssub.s32 1, %s6
  %s9 = scalar_select 0, %s8, %s6
  $region1: #{tpu_custom_call.1} parent=0
    #allocation3 [shape = 'u8[49152]{0}', space=vmem, size = 0xc000, scoped, tag = 'input window, operand 0, single buffered']
    #allocation4 [shape = 's32[1]{0}', space=sflag, size = 0x4, scoped, tag = 'scoped memory for tpu_custom_call.1']
    #allocation5 [shape = 's32[1]{0}', space=sflag, size = 0x4, scoped, tag = 'scoped memory for tpu_custom_call.1']
    #allocation6 [shape = 'u8[32768]{0}', space=vmem, size = 0x8000, scoped, tag = 'input window, operand 1, single buffered']
    #allocation7 [shape = 's32[1]{0}', space=sflag, size = 0x4, scoped, tag = 'scoped memory for tpu_custom_call.1']
    #allocation8 [shape = 'u8[32768]{0}', space=vmem, size = 0x8000, scoped, tag = 'input window, operand 3, single buffered']
    #allocation9 [shape = 'u8[4096]{0}', space=vmem, size = 0x1000, scoped, tag = 'output window, operand 0, single buffered']
    %10 = vsyncpa [#allocation4], 0
    %11 = vsyncpa [#allocation7], 0
    %12 = vsyncpa [#allocation5], 0
    // Predicated region
    $region2: #{tpu_custom_call.1} parent=1 // pred_check
      _
    $region3: #{tpu_custom_call.1} parent=1 // pred_check_branch
      %14 = sbr.rel (0) target = $region5
    $region4: #{tpu_custom_call.1} parent=1 // pred_region
      %s16 = ssub.s32 1536, 1536
      %17 = vsyncadd [#allocation4], %s16
      %s18 = sshll.u32 [#allocation3], 4
      %s19 = int_to_ptr.vmem [resolvable:$true] %s18
      %24 = dma.hbm_to_vmem [thread:$0]  %s0, 1536, %s19, [#allocation4], 64, 64, 4
    $region5: #{tpu_custom_call.1} parent=1 // pred_fallthru
      _
    // Predicated region
    $region6: #{tpu_custom_call.1} parent=1 // pred_check
      _
    $region7: #{tpu_custom_call.1} parent=1 // pred_check_branch
      %26 = sbr.rel (0) target = $region9
    $region8: #{tpu_custom_call.1} parent=1 // pred_region
      %s28 = ssub.s32 1024, 1024
      %29 = vsyncadd [#allocation7], %s28
      %s30 = sshll.u32 [#allocation6], 4
      %s31 = int_to_ptr.vmem [resolvable:$true] %s30
      %36 = dma.hbm_to_vmem [thread:$0]  %s1, 1024, %s31, [#allocation7], 64, 64, 4
    $region9: #{tpu_custom_call.1} parent=1 // pred_fallthru
      _
    // Predicated region
    $region10: #{tpu_custom_call.1} parent=1 // pred_check
      _
    $region11: #{tpu_custom_call.1} parent=1 // pred_check_branch
      %38 = sbr.rel (0) target = $region13
    $region12: #{tpu_custom_call.1} parent=1 // pred_region
      _
    $region13: #{tpu_custom_call.1} parent=1 // pred_fallthru
      _
    // Predicated region
    $region14: #{tpu_custom_call.1} parent=1 // pred_check
      _
    $region15: #{tpu_custom_call.1} parent=1 // pred_check_branch
      %40 = sbr.rel (0) target = $region17
    $region16: #{tpu_custom_call.1} parent=1 // pred_region
      %s42 = ssub.s32 1024, 1024
      %43 = vsyncadd [#allocation7], %s42
      %s44 = sshll.u32 [#allocation8], 4
      %s45 = int_to_ptr.vmem [resolvable:$true] %s44
      %50 = dma.hbm_to_vmem [thread:$0]  %s3, 1024, %s45, [#allocation7], 64, 64, 4
    $region17: #{tpu_custom_call.1} parent=1 // pred_fallthru
      _
    // Predicated region
    $region18: #{tpu_custom_call.1} parent=1 // pred_check
      _
    $region19: #{tpu_custom_call.1} parent=1 // pred_check_branch
      %52 = sbr.rel (0) target = $region21
    $region20: #{tpu_custom_call.1} parent=1 // pred_region
      _
    $region21: #{tpu_custom_call.1} parent=1 // pred_fallthru
      _
    // Predicated region
    $region22: #{tpu_custom_call.1} parent=1 // pred_check
      _
    $region23: #{tpu_custom_call.1} parent=1 // pred_check_branch
      %54 = sbr.rel (0) target = $region25
    $region24: #{tpu_custom_call.1} parent=1 // pred_region
      %55 = dma.done [#allocation4], 1536
    $region25: #{tpu_custom_call.1} parent=1 // pred_fallthru
      _
    // Predicated region
    $region26: #{tpu_custom_call.1} parent=1 // pred_check
      _
    $region27: #{tpu_custom_call.1} parent=1 // pred_check_branch
      %57 = sbr.rel (0) target = $region29
    $region28: #{tpu_custom_call.1} parent=1 // pred_region
      %58 = dma.done [#allocation7], 1024
    $region29: #{tpu_custom_call.1} parent=1 // pred_fallthru
      _
    // Predicated region
    $region30: #{tpu_custom_call.1} parent=1 // pred_check
      _
    $region31: #{tpu_custom_call.1} parent=1 // pred_check_branch
      %60 = sbr.rel (0) target = $region33
    $region32: #{tpu_custom_call.1} parent=1 // pred_region
      %61 = dma.done [#allocation7], 1024
    $region33: #{tpu_custom_call.1} parent=1 // pred_fallthru
      _
    %v63 = vlaneseq
    %v64 = vand.u32 %v63, 127
    %vm65 = vcmp.ge.s32.totalorder %v64, 0
    %vm66 = vcmp.lt.s32.totalorder %v64, 4
    %vm67 = vmand %vm65, %vm66
    %v68 = vsel %vm67, 15, 0
    %vm69 = vcmp.ge.s32.totalorder %v64, 4
    %vm70 = vcmp.lt.s32.totalorder %v64, 8
    %vm71 = vmand %vm69, %vm70
    %v72 = vsel %vm71, 14, %v68
    %v73 = vlaneseq
    %v74 = vshrl.u32 %v73, 7
    %v75 = vadd.s32 %v74, 8
    %v76 = vld [vmem:[#allocation3] sm:$0xf]
    %v77 = vld [vmem:[#allocation3 + $0x4] sm:$0xf]
    %v78 = vld [vmem:[#allocation3 + $0x8] sm:$0xf]
    %v79 = vld [vmem:[#allocation3 + $0xc] sm:$0xf]
    %v80 = vld [vmem:[#allocation3 + $0x10] sm:$0xf]
    %v81 = vld [vmem:[#allocation3 + $0x14] sm:$0xf]
    %v82 = vld [vmem:[#allocation3 + $0x18] sm:$0xf]
    %v83 = vld [vmem:[#allocation3 + $0x1c] sm:$0xf]
    %v84 = vld [vmem:[#allocation3 + $0x20] sm:$0xf]
    %v85 = vld [vmem:[#allocation3 + $0x24] sm:$0xf]
    %v86 = vld [vmem:[#allocation3 + $0x28] sm:$0xf]
    %v87 = vld [vmem:[#allocation3 + $0x2c] sm:$0xf]
    %v88 = vld [vmem:[#allocation3 + $0x30] sm:$0xf]
    %v89 = vld [vmem:[#allocation3 + $0x34] sm:$0xf]
    %v90 = vld [vmem:[#allocation3 + $0x38] sm:$0xf]
    %v91 = vld [vmem:[#allocation3 + $0x3c] sm:$0xf]
    %v92 = vld [vmem:[#allocation3 + $0x40] sm:$0xf]
    %v93 = vld [vmem:[#allocation3 + $0x44] sm:$0xf]
    %v94 = vld [vmem:[#allocation3 + $0x48] sm:$0xf]
    %v95 = vld [vmem:[#allocation3 + $0x4c] sm:$0xf]
    %v96 = vld [vmem:[#allocation3 + $0x50] sm:$0xf]
    %v97 = vld [vmem:[#allocation3 + $0x54] sm:$0xf]
    %v98 = vld [vmem:[#allocation3 + $0x58] sm:$0xf]
    %v99 = vld [vmem:[#allocation3 + $0x5c] sm:$0xf]
    %v116 = vunpack.c.l.b16 %v76
    %v117 = vunpack.c.l.b16 %v77
    %v118 = vunpack.c.l.b16 %v79
    %v119 = vunpack.c.l.b16 %v80
    %v120 = vunpack.c.l.b16 %v82
    %v121 = vunpack.c.l.b16 %v83
    %v122 = vunpack.c.l.b16 %v85
    %v123 = vunpack.c.l.b16 %v86
    %v124 = vunpack.c.l.b16 %v88
    %v125 = vunpack.c.l.b16 %v89
    %v126 = vunpack.c.l.b16 %v91
    %v127 = vunpack.c.l.b16 %v92
    %v128 = vunpack.c.l.b16 %v94
    %v129 = vunpack.c.l.b16 %v95
    %v130 = vunpack.c.l.b16 %v97
    %v131 = vunpack.c.l.b16 %v98
    %v132 = vpack.c.b16 %v117, %v116
    %v133 = vpack.c.b16 %v119, %v118
    %v134 = vpack.c.b16 %v121, %v120
    %v135 = vpack.c.b16 %v123, %v122
    %v136 = vpack.c.b16 %v125, %v124
    %v137 = vpack.c.b16 %v127, %v126
    %v138 = vpack.c.b16 %v129, %v128
    %v139 = vpack.c.b16 %v131, %v130
    %v148 = vunpack.c.l.b16 %v78
    %v149 = vunpack.c.l.b16 %v81
    %v150 = vunpack.c.l.b16 %v84
    %v151 = vunpack.c.l.b16 %v87
    %v152 = vunpack.c.l.b16 %v90
    %v153 = vunpack.c.l.b16 %v93
    %v154 = vunpack.c.l.b16 %v96
    %v155 = vunpack.c.l.b16 %v99
    %v156 = vpack.c.b16 %v148, %v148
    %v157 = vpack.c.b16 %v149, %v149
    %v158 = vpack.c.b16 %v150, %v150
    %v159 = vpack.c.b16 %v151, %v151
    %v160 = vpack.c.b16 %v152, %v152
    %v161 = vpack.c.b16 %v153, %v153
    %v162 = vpack.c.b16 %v154, %v154
    %v163 = vpack.c.b16 %v155, %v155
    %vm164 = vsmask.f32 7424
    %v166 = vshrl.u32 %v132, 16
    %v168 = vshll.u32 %v132, 16
    %v170 = vrot.slane %v168, 1
    %v171 = vor.u32 %v166, %v170
    %v173 = vshll.u32 %v156, 16
    %v175 = vrot.slane %v173, 1
    %v176 = vsel %vm164, %v171, %v175
    %v178 = vshrl.u32 %v133, 16
    %v180 = vshll.u32 %v133, 16
    %v182 = vrot.slane %v180, 1
    %v183 = vor.u32 %v178, %v182
    %v185 = vshll.u32 %v157, 16
    %v187 = vrot.slane %v185, 1
    %v188 = vsel %vm164, %v183, %v187
    %v190 = vshrl.u32 %v134, 16
    %v192 = vshll.u32 %v134, 16
    %v194 = vrot.slane %v192, 1
    %v195 = vor.u32 %v190, %v194
    %v197 = vshll.u32 %v158, 16
    %v199 = vrot.slane %v197, 1
    %v200 = vsel %vm164, %v195, %v199
    %v202 = vshrl.u32 %v135, 16
    %v204 = vshll.u32 %v135, 16
    %v206 = vrot.slane %v204, 1
    %v207 = vor.u32 %v202, %v206
    %v209 = vshll.u32 %v159, 16
    %v211 = vrot.slane %v209, 1
    %v212 = vsel %vm164, %v207, %v211
    %v214 = vshrl.u32 %v136, 16
    %v216 = vshll.u32 %v136, 16
    %v218 = vrot.slane %v216, 1
    %v219 = vor.u32 %v214, %v218
    %v221 = vshll.u32 %v160, 16
    %v223 = vrot.slane %v221, 1
    %v224 = vsel %vm164, %v219, %v223
    %v226 = vshrl.u32 %v137, 16
    %v228 = vshll.u32 %v137, 16
    %v230 = vrot.slane %v228, 1
    %v231 = vor.u32 %v226, %v230
    %v233 = vshll.u32 %v161, 16
    %v235 = vrot.slane %v233, 1
    %v236 = vsel %vm164, %v231, %v235
    %v238 = vshrl.u32 %v138, 16
    %v240 = vshll.u32 %v138, 16
    %v242 = vrot.slane %v240, 1
    %v243 = vor.u32 %v238, %v242
    %v245 = vshll.u32 %v162, 16
    %v247 = vrot.slane %v245, 1
    %v248 = vsel %vm164, %v243, %v247
    %v250 = vshrl.u32 %v139, 16
    %v252 = vshll.u32 %v139, 16
    %v254 = vrot.slane %v252, 1
    %v255 = vor.u32 %v250, %v254
    %v257 = vshll.u32 %v163, 16
    %v259 = vrot.slane %v257, 1
    %v260 = vsel %vm164, %v255, %v259
    %261 = vrot.lane.b32.xlu0 %v176, 32
    %v262 = vpop.permute.xlu0 %261
    %263 = vrot.lane.b32.xlu0 %v188, 32
    %v264 = vpop.permute.xlu0 %263
    %265 = vrot.lane.b32.xlu0 %v200, 32
    %v266 = vpop.permute.xlu0 %265
    %267 = vrot.lane.b32.xlu0 %v212, 32
    %v268 = vpop.permute.xlu0 %267
    %269 = vrot.lane.b32.xlu0 %v224, 32
    %v270 = vpop.permute.xlu0 %269
    %271 = vrot.lane.b32.xlu0 %v236, 32
    %v272 = vpop.permute.xlu0 %271
    %273 = vrot.lane.b32.xlu0 %v248, 32
    %v274 = vpop.permute.xlu0 %273
    %275 = vrot.lane.b32.xlu0 %v260, 32
    %v276 = vpop.permute.xlu0 %275
    %vm277 = vcmask 1046528
    %v278 = vrot.slane %v132, 1
    %v279 = vrot.slane %v156, 1
    %v280 = vsel %vm277, %v278, %v279
    %v281 = vrot.slane %v133, 1
    %v282 = vrot.slane %v157, 1
    %v283 = vsel %vm277, %v281, %v282
    %v284 = vrot.slane %v134, 1
    %v285 = vrot.slane %v158, 1
    %v286 = vsel %vm277, %v284, %v285
    %v287 = vrot.slane %v135, 1
    %v288 = vrot.slane %v159, 1
    %v289 = vsel %vm277, %v287, %v288
    %v290 = vrot.slane %v136, 1
    %v291 = vrot.slane %v160, 1
    %v292 = vsel %vm277, %v290, %v291
    %v293 = vrot.slane %v137, 1
    %v294 = vrot.slane %v161, 1
    %v295 = vsel %vm277, %v293, %v294
    %v296 = vrot.slane %v138, 1
    %v297 = vrot.slane %v162, 1
    %v298 = vsel %vm277, %v296, %v297
    %v299 = vrot.slane %v139, 1
    %v300 = vrot.slane %v163, 1
    %v301 = vsel %vm277, %v299, %v300
    %302 = vrot.lane.b32.xlu0 %v280, 64
    %v303 = vpop.permute.xlu0 %302
    %304 = vrot.lane.b32.xlu0 %v283, 64
    %v305 = vpop.permute.xlu0 %304
    %306 = vrot.lane.b32.xlu0 %v286, 64
    %v307 = vpop.permute.xlu0 %306
    %308 = vrot.lane.b32.xlu0 %v289, 64
    %v309 = vpop.permute.xlu0 %308
    %310 = vrot.lane.b32.xlu0 %v292, 64
    %v311 = vpop.permute.xlu0 %310
    %312 = vrot.lane.b32.xlu0 %v295, 64
    %v313 = vpop.permute.xlu0 %312
    %314 = vrot.lane.b32.xlu0 %v298, 64
    %v315 = vpop.permute.xlu0 %314
    %316 = vrot.lane.b32.xlu0 %v301, 64
    %v317 = vpop.permute.xlu0 %316
    %vm318 = vcmask 261120
    %v320 = vsel %vm318, %v132, %v262
    %v322 = vsel %vm318, %v133, %v264
    %v324 = vsel %vm318, %v134, %v266
    %v326 = vsel %vm318, %v135, %v268
    %v328 = vsel %vm318, %v136, %v270
    %v330 = vsel %vm318, %v137, %v272
    %v332 = vsel %vm318, %v138, %v274
    %v334 = vsel %vm318, %v139, %v276
    %vm335 = vcmask 523264
    %v337 = vsel %vm335, %v320, %v303
    %v339 = vsel %vm335, %v322, %v305
    %v341 = vsel %vm335, %v324, %v307
    %v343 = vsel %vm335, %v326, %v309
    %v345 = vsel %vm335, %v328, %v311
    %v347 = vsel %vm335, %v330, %v313
    %v349 = vsel %vm335, %v332, %v315
    %v351 = vsel %vm335, %v334, %v317
    %vm352 = vcmask 785408
    %v354 = vsel %vm352, %v337, 0
    %v356 = vsel %vm352, %v339, 0
    %v358 = vsel %vm352, %v341, 0
    %v360 = vsel %vm352, %v343, 0
    %v362 = vsel %vm352, %v345, 0
    %v364 = vsel %vm352, %v347, 0
    %v366 = vsel %vm352, %v349, 0
    %v368 = vsel %vm352, %v351, 0
    %v370 = vld [vmem:[#allocation6] sm:$0xf]
    %v371 = vld [vmem:[#allocation6 + $0x4] sm:$0xf]
    %v372 = vld [vmem:[#allocation6 + $0x8] sm:$0xf]
    %v373 = vld [vmem:[#allocation6 + $0xc] sm:$0xf]
    %v374 = vld [vmem:[#allocation6 + $0x10] sm:$0xf]
    %v375 = vld [vmem:[#allocation6 + $0x14] sm:$0xf]
    %v376 = vld [vmem:[#allocation6 + $0x18] sm:$0xf]
    %v377 = vld [vmem:[#allocation6 + $0x1c] sm:$0xf]
    %v378 = vld [vmem:[#allocation6 + $0x20] sm:$0xf]
    %v379 = vld [vmem:[#allocation6 + $0x24] sm:$0xf]
    %v380 = vld [vmem:[#allocation6 + $0x28] sm:$0xf]
    %v381 = vld [vmem:[#allocation6 + $0x2c] sm:$0xf]
    %v382 = vld [vmem:[#allocation6 + $0x30] sm:$0xf]
    %v383 = vld [vmem:[#allocation6 + $0x34] sm:$0xf]
    %v384 = vld [vmem:[#allocation6 + $0x38] sm:$0xf]
    %v385 = vld [vmem:[#allocation6 + $0x3c] sm:$0xf]
    %v402 = vunpack.c.l.b16 %v370
    %v403 = vunpack.c.l.b16 %v371
    %v404 = vunpack.c.l.b16 %v372
    %v405 = vunpack.c.l.b16 %v373
    %v406 = vunpack.c.l.b16 %v374
    %v407 = vunpack.c.l.b16 %v375
    %v408 = vunpack.c.l.b16 %v376
    %v409 = vunpack.c.l.b16 %v377
    %v410 = vunpack.c.l.b16 %v378
    %v411 = vunpack.c.l.b16 %v379
    %v412 = vunpack.c.l.b16 %v380
    %v413 = vunpack.c.l.b16 %v381
    %v414 = vunpack.c.l.b16 %v382
    %v415 = vunpack.c.l.b16 %v383
    %v416 = vunpack.c.l.b16 %v384
    %v417 = vunpack.c.l.b16 %v385
    %v418 = vpack.c.b16 %v403, %v402
    %v419 = vpack.c.b16 %v405, %v404
    %v420 = vpack.c.b16 %v407, %v406
    %v421 = vpack.c.b16 %v409, %v408
    %v422 = vpack.c.b16 %v411, %v410
    %v423 = vpack.c.b16 %v413, %v412
    %v424 = vpack.c.b16 %v415, %v414
    %v425 = vpack.c.b16 %v417, %v416
    %434 = vmatprep.subr.bf16.mxu0 0
    %435 = vmatpush1.bf16.msra.mxu0 %v418
    %436 = vmatprep.subr.bf16.mxu0 0
    %437 = vmatpush1.bf16.msra.mxu0 %v419
    %438 = vmatprep.subr.bf16.mxu0 0
    %439 = vmatpush1.bf16.msra.mxu0 %v420
    %440 = vmatprep.subr.bf16.mxu0 0
    %441 = vmatpush1.bf16.msra.mxu0 %v421
    %442 = vmatprep.subr.bf16.mxu0 0
    %443 = vmatpush1.bf16.msra.mxu0 %v422
    %444 = vmatprep.subr.bf16.mxu0 0
    %445 = vmatpush1.bf16.msra.mxu0 %v423
    %446 = vmatprep.subr.bf16.mxu0 0
    %447 = vmatpush1.bf16.msra.mxu0 %v424
    %448 = vmatprep.subr.bf16.mxu0 0
    %449 = vmatpush1.bf16.msra.mxu0 %v425
    %450 = vmatprep.subr.bf16.mxu0 0
    %451 = vmatpush1.bf16.msra.mxu0 0
    %452 = vmatprep.subr.bf16.mxu0 0
    %453 = vmatpush1.bf16.msra.mxu0 0
    %454 = vmatprep.subr.bf16.mxu0 0
    %455 = vmatpush1.bf16.msra.mxu0 0
    %456 = vmatprep.subr.bf16.mxu0 0
    %457 = vmatpush1.bf16.msra.mxu0 0
    %458 = vmatprep.subr.bf16.mxu0 0
    %459 = vmatpush1.bf16.msra.mxu0 0
    %460 = vmatprep.subr.bf16.mxu0 0
    %461 = vmatpush1.bf16.msra.mxu0 0
    %462 = vmatprep.subr.bf16.mxu0 0
    %463 = vmatpush1.bf16.msra.mxu0 0
    %464 = vmatprep.subr.bf16.mxu0 0
    %465 = vmatpush1.bf16.msra.mxu0 0
    %466 = vmatprep.mubr.bf16.mxu0 0
    %467 = vmatmul.mubr.bf16.gmra.mrb[0].mxu0 %v354
    %v468 = vpop.f32.mrb[0].mxu0
    %v469 = vadd.f32 0.0, %v468
    %v470 = vpop.f32.mrb[0].mxu0
    %v471 = vpop.f32.mrb[0].mxu0
    %v472 = vadd.f32 0.0, %v471
    %v473 = vpop.f32.mrb[0].mxu0
    %474 = vmatprep.mubr.bf16.mxu0 0
    %475 = vmatmul.mubr.bf16.gmra.mrb[0].mxu0 %v356
    %v476 = vpop.f32.mrb[0].mxu0
    %v477 = vadd.f32 0.0, %v476
    %v478 = vpop.f32.mrb[0].mxu0
    %v479 = vpop.f32.mrb[0].mxu0
    %v480 = vadd.f32 0.0, %v479
    %v481 = vpop.f32.mrb[0].mxu0
    %482 = vmatprep.mubr.bf16.mxu0 0
    %483 = vmatmul.mubr.bf16.gmra.mrb[0].mxu0 %v358
    %v484 = vpop.f32.mrb[0].mxu0
    %v485 = vadd.f32 0.0, %v484
    %v486 = vpop.f32.mrb[0].mxu0
    %v487 = vpop.f32.mrb[0].mxu0
    %v488 = vadd.f32 0.0, %v487
    %v489 = vpop.f32.mrb[0].mxu0
    %490 = vmatprep.mubr.bf16.mxu0 0
    %491 = vmatmul.mubr.bf16.gmra.mrb[0].mxu0 %v360
    %v492 = vpop.f32.mrb[0].mxu0
    %v493 = vadd.f32 0.0, %v492
    %v494 = vpop.f32.mrb[0].mxu0
    %v495 = vpop.f32.mrb[0].mxu0
    %v496 = vadd.f32 0.0, %v495
    %v497 = vpop.f32.mrb[0].mxu0
    %498 = vmatprep.mubr.bf16.mxu0 0
    %499 = vmatmul.mubr.bf16.gmra.mrb[0].mxu0 %v362
    %v500 = vpop.f32.mrb[0].mxu0
    %v501 = vadd.f32 0.0, %v500
    %v502 = vpop.f32.mrb[0].mxu0
    %v503 = vpop.f32.mrb[0].mxu0
    %v504 = vadd.f32 0.0, %v503
    %v505 = vpop.f32.mrb[0].mxu0
    %506 = vmatprep.mubr.bf16.mxu0 0
    %507 = vmatmul.mubr.bf16.gmra.mrb[0].mxu0 %v364
    %v508 = vpop.f32.mrb[0].mxu0
    %v509 = vadd.f32 0.0, %v508
    %v510 = vpop.f32.mrb[0].mxu0
    %v511 = vpop.f32.mrb[0].mxu0
    %v512 = vadd.f32 0.0, %v511
    %v513 = vpop.f32.mrb[0].mxu0
    %514 = vmatprep.mubr.bf16.mxu0 0
    %515 = vmatmul.mubr.bf16.gmra.mrb[0].mxu0 %v366
    %v516 = vpop.f32.mrb[0].mxu0
    %v517 = vadd.f32 0.0, %v516
    %v518 = vpop.f32.mrb[0].mxu0
    %v519 = vpop.f32.mrb[0].mxu0
    %v520 = vadd.f32 0.0, %v519
    %v521 = vpop.f32.mrb[0].mxu0
    %522 = vmatprep.mubr.bf16.mxu0 0
    %523 = vmatmul.mubr.bf16.gmra.mrb[0].mxu0 %v368
    %v524 = vpop.f32.mrb[0].mxu0
    %v525 = vadd.f32 0.0, %v524
    %v526 = vpop.f32.mrb[0].mxu0
    %v527 = vpop.f32.mrb[0].mxu0
    %v528 = vadd.f32 0.0, %v527
    %v529 = vpop.f32.mrb[0].mxu0
    %530 = vdwg.mxu0
    %vm531 = vcmp.lt.s32.totalorder %v74, %v72
    %vm532 = vcmp.lt.s32.totalorder %v75, %v72
    %v533 = vsel %vm531, 1, 0
    %v534 = vsel %vm532, 1, 0
    %vm535 = vcmp.eq.s32.totalorder %v533, 1
    %vm536 = vcmp.eq.s32.totalorder %v534, 1
    %v537 = vsel %vm535, %v469, -inf
    %v538 = vsel %vm536, %v472, -inf
    %v539 = vsel %vm535, %v477, -inf
    %v540 = vsel %vm536, %v480, -inf
    %v541 = vsel %vm535, %v485, -inf
    %v542 = vsel %vm536, %v488, -inf
    %v543 = vsel %vm535, %v493, -inf
    %v544 = vsel %vm536, %v496, -inf
    %v545 = vsel %vm535, %v501, -inf
    %v546 = vsel %vm536, %v504, -inf
    %v547 = vsel %vm535, %v509, -inf
    %v548 = vsel %vm536, %v512, -inf
    %v549 = vsel %vm535, %v517, -inf
    %v550 = vsel %vm536, %v520, -inf
    %v551 = vsel %vm535, %v525, -inf
    %v552 = vsel %vm536, %v528, -inf
    %v553 = vmax.f32 %v537, %v538
    %v554 = vrot.slane %v553, 4
    %v555 = vmax.f32 %v553, %v554
    %v556 = vrot.slane %v555, 2
    %v557 = vmax.f32 %v555, %v556
    %v558 = vrot.slane %v557, 1
    %v559 = vmax.f32 %v557, %v558
    %v560 = vmax.f32 %v539, %v540
    %v561 = vrot.slane %v560, 4
    %v562 = vmax.f32 %v560, %v561
    %v563 = vrot.slane %v562, 2
    %v564 = vmax.f32 %v562, %v563
    %v565 = vrot.slane %v564, 1
    %v566 = vmax.f32 %v564, %v565
    %v567 = vmax.f32 %v541, %v542
    %v568 = vrot.slane %v567, 4
    %v569 = vmax.f32 %v567, %v568
    %v570 = vrot.slane %v569, 2
    %v571 = vmax.f32 %v569, %v570
    %v572 = vrot.slane %v571, 1
    %v573 = vmax.f32 %v571, %v572
    %v574 = vmax.f32 %v543, %v544
    %v575 = vrot.slane %v574, 4
    %v576 = vmax.f32 %v574, %v575
    %v577 = vrot.slane %v576, 2
    %v578 = vmax.f32 %v576, %v577
    %v579 = vrot.slane %v578, 1
    %v580 = vmax.f32 %v578, %v579
    %v581 = vmax.f32 %v545, %v546
    %v582 = vrot.slane %v581, 4
    %v583 = vmax.f32 %v581, %v582
    %v584 = vrot.slane %v583, 2
    %v585 = vmax.f32 %v583, %v584
    %v586 = vrot.slane %v585, 1
    %v587 = vmax.f32 %v585, %v586
    %v588 = vmax.f32 %v547, %v548
    %v589 = vrot.slane %v588, 4
    %v590 = vmax.f32 %v588, %v589
    %v591 = vrot.slane %v590, 2
    %v592 = vmax.f32 %v590, %v591
    %v593 = vrot.slane %v592, 1
    %v594 = vmax.f32 %v592, %v593
    %v595 = vmax.f32 %v549, %v550
    %v596 = vrot.slane %v595, 4
    %v597 = vmax.f32 %v595, %v596
    %v598 = vrot.slane %v597, 2
    %v599 = vmax.f32 %v597, %v598
    %v600 = vrot.slane %v599, 1
    %v601 = vmax.f32 %v599, %v600
    %v602 = vmax.f32 %v551, %v552
    %v603 = vrot.slane %v602, 4
    %v604 = vmax.f32 %v602, %v603
    %v605 = vrot.slane %v604, 2
    %v606 = vmax.f32 %v604, %v605
    %v607 = vrot.slane %v606, 1
    %v608 = vmax.f32 %v606, %v607
    %vm617 = vcmask 1041409
    %v618 = vsel %vm617, %v566, %v559
    %vm619 = vcmask 1042434
    %v620 = vsel %vm619, %v573, %v618
    %vm621 = vcmask 1043459
    %v622 = vsel %vm621, %v580, %v620
    %vm623 = vcmask 1044484
    %v624 = vsel %vm623, %v587, %v622
    %vm625 = vcmask 1045509
    %v626 = vsel %vm625, %v594, %v624
    %vm627 = vcmask 1046534
    %v628 = vsel %vm627, %v601, %v626
    %vm629 = vcmask 1047559
    %v630 = vsel %vm629, %v608, %v628
    %632 = vst [vmem:[#allocation2] sm:$0xff] %v630
    %v633 = vld [vmem:[#allocation2] sm:$0xff]
    %v634 = vld [vmem:[%s2] sm:$0x1]
    %v636 = vlaneseq
    %v637 = vshrl.u32 %v636, 7
    %v638 = vsub.s32 0, %v637
    %v639 = vrot.slane %v634, %v638
    %v641 = vadd.f32 %v633, %v639
    %v642 = vmax.f32 %v641, 0.0
    %v643 = vpack.c.bf16 %v642, %v642
    %v644 = vld [vmem:[#allocation8] sm:$0xf]
    %v645 = vld [vmem:[#allocation8 + $0x4] sm:$0xf]
    %v646 = vld [vmem:[#allocation8 + $0x8] sm:$0xf]
    %v647 = vld [vmem:[#allocation8 + $0xc] sm:$0xf]
    %v648 = vld [vmem:[#allocation8 + $0x10] sm:$0xf]
    %v649 = vld [vmem:[#allocation8 + $0x14] sm:$0xf]
    %v650 = vld [vmem:[#allocation8 + $0x18] sm:$0xf]
    %v651 = vld [vmem:[#allocation8 + $0x1c] sm:$0xf]
    %v652 = vld [vmem:[#allocation8 + $0x20] sm:$0xf]
    %v653 = vld [vmem:[#allocation8 + $0x24] sm:$0xf]
    %v654 = vld [vmem:[#allocation8 + $0x28] sm:$0xf]
    %v655 = vld [vmem:[#allocation8 + $0x2c] sm:$0xf]
    %v656 = vld [vmem:[#allocation8 + $0x30] sm:$0xf]
    %v657 = vld [vmem:[#allocation8 + $0x34] sm:$0xf]
    %v658 = vld [vmem:[#allocation8 + $0x38] sm:$0xf]
    %v659 = vld [vmem:[#allocation8 + $0x3c] sm:$0xf]
    %v660 = vld [vmem:[%s4] sm:$0x1]
    %v662 = vlaneseq
    %v663 = vshrl.u32 %v662, 7
    %v664 = vsub.s32 0, %v663
    %v665 = vrot.slane %v660, %v664
    %v683 = vunpack.c.l.b16 %v644
    %v684 = vunpack.c.l.b16 %v645
    %v685 = vunpack.c.l.b16 %v646
    %v686 = vunpack.c.l.b16 %v647
    %v687 = vunpack.c.l.b16 %v648
    %v688 = vunpack.c.l.b16 %v649
    %v689 = vunpack.c.l.b16 %v650
    %v690 = vunpack.c.l.b16 %v651
    %v691 = vunpack.c.l.b16 %v652
    %v692 = vunpack.c.l.b16 %v653
    %v693 = vunpack.c.l.b16 %v654
    %v694 = vunpack.c.l.b16 %v655
    %v695 = vunpack.c.l.b16 %v656
    %v696 = vunpack.c.l.b16 %v657
    %v697 = vunpack.c.l.b16 %v658
    %v698 = vunpack.c.l.b16 %v659
    %v699 = vpack.c.b16 %v684, %v683
    %v700 = vpack.c.b16 %v686, %v685
    %v701 = vpack.c.b16 %v688, %v687
    %v702 = vpack.c.b16 %v690, %v689
    %v703 = vpack.c.b16 %v692, %v691
    %v704 = vpack.c.b16 %v694, %v693
    %v705 = vpack.c.b16 %v696, %v695
    %v706 = vpack.c.b16 %v698, %v697
    %715 = vmatprep.subr.bf16.mxu0 0
    %716 = vmatpush1.bf16.msra.mxu0 %v699
    %717 = vmatprep.subr.bf16.mxu0 0
    %718 = vmatpush1.bf16.msra.mxu0 %v700
    %719 = vmatprep.subr.bf16.mxu0 0
    %720 = vmatpush1.bf16.msra.mxu0 %v701
    %721 = vmatprep.subr.bf16.mxu0 0
    %722 = vmatpush1.bf16.msra.mxu0 %v702
    %723 = vmatprep.subr.bf16.mxu0 0
    %724 = vmatpush1.bf16.msra.mxu0 %v703
    %725 = vmatprep.subr.bf16.mxu0 0
    %726 = vmatpush1.bf16.msra.mxu0 %v704
    %727 = vmatprep.subr.bf16.mxu0 0
    %728 = vmatpush1.bf16.msra.mxu0 %v705
    %729 = vmatprep.subr.bf16.mxu0 0
    %730 = vmatpush1.bf16.msra.mxu0 %v706
    %731 = vmatprep.subr.bf16.mxu0 0
    %732 = vmatpush1.bf16.msra.mxu0 0
    %733 = vmatprep.subr.bf16.mxu0 0
    %734 = vmatpush1.bf16.msra.mxu0 0
    %735 = vmatprep.subr.bf16.mxu0 0
    %736 = vmatpush1.bf16.msra.mxu0 0
    %737 = vmatprep.subr.bf16.mxu0 0
    %738 = vmatpush1.bf16.msra.mxu0 0
    %739 = vmatprep.subr.bf16.mxu0 0
    %740 = vmatpush1.bf16.msra.mxu0 0
    %741 = vmatprep.subr.bf16.mxu0 0
    %742 = vmatpush1.bf16.msra.mxu0 0
    %743 = vmatprep.subr.bf16.mxu0 0
    %744 = vmatpush1.bf16.msra.mxu0 0
    %745 = vmatprep.subr.bf16.mxu0 0
    %746 = vmatpush1.bf16.msra.mxu0 0
    %747 = vmatprep.mubr.bf16.mxu0 0
    %748 = vmatmul.mubr.bf16.gmra.mrb[0].mxu0 %v643
    %v749 = vpop.f32.mrb[0].mxu0
    %v750 = vadd.f32 %v665, %v749
    %v751 = vpop.f32.mrb[0].mxu0
    %v752 = vpop.f32.mrb[0].mxu0
    %v753 = vpop.f32.mrb[0].mxu0
    %754 = vdwg.mxu0
    %v755 = vmax.f32 %v750, 0.0
    %756 = vst [vmem:[#allocation9] sm:$0xff] %v755
    // Predicated region
    $region34: #{tpu_custom_call.1} parent=1 // pred_check
      _
    $region35: #{tpu_custom_call.1} parent=1 // pred_check_branch
      %758 = sbr.rel (0) target = $region37
    $region36: #{tpu_custom_call.1} parent=1 // pred_region
      %s760 = ssub.s32 128, 128
      %761 = vsyncadd [#allocation5], %s760
      %s763 = sshll.u32 [#allocation9], 4
      %s764 = int_to_ptr.vmem [resolvable:$true] %s763
      %766 = dma.vmem_to_hbm [thread:$0]  %s764, 128, %s5, [#allocation5]
    $region37: #{tpu_custom_call.1} parent=1 // pred_fallthru
      _
    // Predicated region
    $region38: #{tpu_custom_call.1} parent=1 // pred_check
      _
    $region39: #{tpu_custom_call.1} parent=1 // pred_check_branch
      %768 = sbr.rel (0) target = $region41
    $region40: #{tpu_custom_call.1} parent=1 // pred_region
      %769 = dma.done [#allocation5], 128
    $region41: #{tpu_custom_call.1} parent=1 // pred_fallthru
      _
    %770 = vsyncpa [#allocation4], 1
    %771 = vsyncpa [#allocation7], 1
    %772 = vsyncpa [#allocation5], 1

</llo_original>
